<compile_context>
chip_gen: v7x
topology: tpu7x:2x2x1
jax: 0.10.0
libtpu: 0.0.40
codegen_flags: <defaults>
</compile_context>

<pallas_src>
import functools

import jax
import jax.numpy as jnp
from jax.experimental import pallas as pl
from jax.experimental.pallas import tpu as pltpu

_EPS = 1e-5
_VMEM_LIMIT = 48 * 1024 * 1024     # headroom under v7x's 64 MiB physical VMEM


def _layernorm(v, g, b):
    # one-pass variance: E[x^2] - mean^2 halves the cross-lane reductions
    mu = jnp.mean(v, axis=-1, keepdims=True)
    var = jnp.maximum(jnp.mean(v * v, axis=-1, keepdims=True) - mu * mu, 0.0)
    return (v - mu) * jax.lax.rsqrt(var + _EPS) * g + b


def _mm(a, w):
    # (M, K) @ (K, N) on the MXU: bf16 operands, f32 accumulation, no transposes.
    return jax.lax.dot_general(
        a.astype(jnp.bfloat16), w,
        (((1,), (0,)), ((), ())),
        preferred_element_type=jnp.float32)


# ---------------------------------------------------------------------------
# Kernel 1: LayerNorm1 + fused QKV projection (1/sqrt(d) already folded into W_q)
# ---------------------------------------------------------------------------
def ln_qkv_kernel(x_ref, g_ref, b_ref, wqkv_ref, bqkv_ref, qkv_ref):
    x = x_ref[0]                                   # (TM, E) f32
    h = _layernorm(x, g_ref[0], b_ref[0])
    qkv_ref[0] = _mm(h, wqkv_ref[...]) + bqkv_ref[0]


# ---------------------------------------------------------------------------
# Kernel 2: flash-style causal attention, online softmax, grid (B, H, nq, nk)
# ---------------------------------------------------------------------------
def flash_attn_kernel(q_ref, k_ref, v_ref, o_ref, m_sc, l_sc, acc_sc, *, tq, tk):
    qi = pl.program_id(2)
    ki = pl.program_id(3)

    @pl.when(ki == 0)
    def _():
        m_sc[...] = jnp.full_like(m_sc, -jnp.inf)
        l_sc[...] = jnp.zeros_like(l_sc)
        acc_sc[...] = jnp.zeros_like(acc_sc)

    # Skip KV tiles that lie entirely above the causal diagonal.
    @pl.when(ki * tk <= qi * tq + (tq - 1))
    def _():
        q = q_ref[0, 0].astype(jnp.bfloat16)       # (TQ, d); scale folded in upstream
        k = k_ref[0, 0].astype(jnp.bfloat16)       # (TK, d)
        v = v_ref[0, 0].astype(jnp.bfloat16)       # (TK, d)

        # Q.K^T without transposing K: contract on head_dim.
        s = jax.lax.dot_general(q, k, (((1,), (1,)), ((), ())),
                                preferred_element_type=jnp.float32)   # (TQ, TK)

        # Per-tile causal mask from tile offsets (TQ x TK, never N x N).
        rows = qi * tq + jax.lax.broadcasted_iota(jnp.int32, (tq, tk), 0)
        cols = ki * tk + jax.lax.broadcasted_iota(jnp.int32, (tq, tk), 1)
        s = jnp.where(rows >= cols, s, -jnp.inf)

        m_prev = m_sc[...]
        m_new = jnp.maximum(m_prev, jnp.max(s, axis=-1, keepdims=True))
        alpha = jnp.exp(m_prev - m_new)
        p = jnp.exp(s - m_new)
        l_sc[...] = alpha * l_sc[...] + jnp.sum(p, axis=-1, keepdims=True)
        acc_sc[...] = alpha * acc_sc[...] + jax.lax.dot_general(
            p.astype(jnp.bfloat16), v, (((1,), (0,)), ((), ())),
            preferred_element_type=jnp.float32)
        m_sc[...] = m_new

    # TODO(synk): attn_dropout is identity (eval mode).
    @pl.when(ki == pl.num_programs(3) - 1)
    def _():
        inv_l = pl.reciprocal(l_sc[...], approx=True)
        o_ref[0, 0] = (acc_sc[...] * inv_l).astype(o_ref.dtype)


# ---------------------------------------------------------------------------
# Kernel 3: out-proj + residual + LayerNorm2 + GELU MLP + residual
# ---------------------------------------------------------------------------
def post_attn_kernel(x_ref, a_ref, wout_ref, bout_ref, g2_ref, b2_ref,
                     w1_ref, b1_ref, w2_ref, c2_ref, o_ref):
    x = x_ref[0]                                   # (TM, E)
    a = a_ref[0]                                   # (TM, E) attention output
    x1 = x + _mm(a, wout_ref[...]) + bout_ref[0]   # residual 1
    # TODO(synk): proj_dropout / MLP dropout are identity (eval mode).
    h2 = _layernorm(x1, g2_ref[0], b2_ref[0])
    m = _mm(h2, w1_ref[...]) + b1_ref[0]
    m = jax.nn.gelu(m, approximate=False)          # exact GELU (PyTorch default), f32
    o_ref[0] = x1 + _mm(m, w2_ref[...]) + c2_ref[0]


# ---------------------------------------------------------------------------
# Wrapper
# ---------------------------------------------------------------------------
def transformer_block(x, params, *, num_heads, row_tile=256, q_tile=256, kv_tile=256):
    B, N, E = x.shape
    H = num_heads
    assert E % H == 0
    d = E // H
    f32, bf16 = jnp.float32, jnp.bfloat16

    TM = min(row_tile, N)
    TQ = min(q_tile, N)
    TK = min(kv_tile, N)
    assert N % TM == 0 and N % TQ == 0 and N % TK == 0

    # Fold the softmax 1/sqrt(head_dim) scale into the Q columns of the QKV projection.
    scale = d ** -0.5
    wqkv = params["wqkv"].astype(f32).at[:, :E].multiply(scale).astype(bf16)
    bqkv = params["bqkv"].astype(f32).at[:, :E].multiply(scale)

    wout = params["wout"].astype(bf16)
    w1 = params["w1"].astype(bf16)
    w2 = params["w2"].astype(bf16)

    # Whole-array VMEM operands: weights/biases resident, single copy (no double buffering).
    vmem = pl.BlockSpec(memory_space=pltpu.MemorySpace.VMEM)
    cparams = lambda sem: pltpu.CompilerParams(
        dimension_semantics=sem, vmem_limit_bytes=_VMEM_LIMIT)

    # ---- 1) LN1 + QKV projection -------------------------------------------
    qkv = pl.pallas_call(
        ln_qkv_kernel,
        out_shape=jax.ShapeDtypeStruct((B, N, 3 * E), f32),
        grid_spec=pltpu.PrefetchScalarGridSpec(
            num_scalar_prefetch=0,
            grid=(B, N // TM),
            in_specs=[
                pl.BlockSpec((1, TM, E), lambda b, i: (b, i, 0)),
                vmem, vmem, vmem, vmem,
            ],
            out_specs=pl.BlockSpec((1, TM, 3 * E), lambda b, i: (b, i, 0)),
        ),
        compiler_params=cparams(("parallel", "parallel")),
    )(x, params["ln1_g"], params["ln1_b"], wqkv, bqkv)

    # Split heads in the XLA wrapper (layout plumbing, not kernel compute).
    q, k, v = jnp.split(qkv, 3, axis=-1)
    to_heads = lambda t: t.reshape(B, N, H, d).transpose(0, 2, 1, 3)   # (B, H, N, d)
    q, k, v = to_heads(q), to_heads(k), to_heads(v)

    # ---- 2) flash causal attention -----------------------------------------
    attn = pl.pallas_call(
        functools.partial(flash_attn_kernel, tq=TQ, tk=TK),
        out_shape=jax.ShapeDtypeStruct((B, H, N, d), f32),
        grid_spec=pltpu.PrefetchScalarGridSpec(
            num_scalar_prefetch=0,
            grid=(B, H, N // TQ, N // TK),
            in_specs=[
                pl.BlockSpec((1, 1, TQ, d), lambda b, h, qi, ki: (b, h, qi, 0)),
                pl.BlockSpec((1, 1, TK, d), lambda b, h, qi, ki: (b, h, ki, 0)),
                pl.BlockSpec((1, 1, TK, d), lambda b, h, qi, ki: (b, h, ki, 0)),
            ],
            out_specs=pl.BlockSpec((1, 1, TQ, d), lambda b, h, qi, ki: (b, h, qi, 0)),
            scratch_shapes=[
                pltpu.VMEM((TQ, 1), f32),     # running row max m
                pltpu.VMEM((TQ, 1), f32),     # running denominator l
                pltpu.VMEM((TQ, d), f32),     # output accumulator
            ],
        ),
        compiler_params=cparams(("parallel", "parallel", "parallel", "arbitrary")),
    )(q, k, v)

    attn = attn.transpose(0, 2, 1, 3).reshape(B, N, E)

    # ---- 3) out-proj + residual + LN2 + MLP + residual ----------------------
    out = pl.pallas_call(
        post_attn_kernel,
        out_shape=jax.ShapeDtypeStruct((B, N, E), f32),
        grid_spec=pltpu.PrefetchScalarGridSpec(
            num_scalar_prefetch=0,
            grid=(B, N // TM),
            in_specs=[
                pl.BlockSpec((1, TM, E), lambda b, i: (b, i, 0)),   # x
                pl.BlockSpec((1, TM, E), lambda b, i: (b, i, 0)),   # attention output
                vmem, vmem, vmem, vmem, vmem, vmem, vmem, vmem,
            ],
            out_specs=pl.BlockSpec((1, TM, E), lambda b, i: (b, i, 0)),
        ),
        compiler_params=cparams(("parallel", "parallel")),
    )(x, attn, wout, params["bout"], params["ln2_g"], params["ln2_b"],
      w1, params["b1"], w2, params["b2"])

    return out


# ---------------------------------------------------------------------------
# Pure-JAX f32 reference replicating the PyTorch forward (eval mode)
# ---------------------------------------------------------------------------
def reference_transformer_block(x, params, *, num_heads):
    B, N, E = x.shape
    d = E // num_heads
    f32 = jnp.float32
    wqkv = params["wqkv"].astype(f32)
    wout = params["wout"].astype(f32)
    w1 = params["w1"].astype(f32)
    w2 = params["w2"].astype(f32)

    def ln(v, g, b):
        mu = jnp.mean(v, axis=-1, keepdims=True)
        var = jnp.mean((v - mu) ** 2, axis=-1, keepdims=True)
        return (v - mu) / jnp.sqrt(var + _EPS) * g[0] + b[0]

    h = ln(x, params["ln1_g"], params["ln1_b"])
    qkv = h @ wqkv + params["bqkv"][0]
    q, k, v = jnp.split(qkv, 3, axis=-1)
    rs = lambda t: t.reshape(B, N, num_heads, d).transpose(0, 2, 1, 3)
    q, k, v = rs(q), rs(k), rs(v)
    s = jnp.einsum("bhnd,bhmd->bhnm", q, k) * d ** -0.5
    mask = jnp.tril(jnp.ones((N, N)))
    s = jnp.where(mask == 0, -jnp.inf, s)
    p = jax.nn.softmax(s, axis=-1)
    o = jnp.einsum("bhnm,bhmd->bhnd", p, v).transpose(0, 2, 1, 3).reshape(B, N, E)
    x1 = x + (o @ wout + params["bout"][0])
    h2 = ln(x1, params["ln2_g"], params["ln2_b"])
    m = jax.nn.gelu(h2 @ w1 + params["b1"][0], approximate=False)
    return x1 + (m @ w2 + params["b2"][0])


if __name__ == "__main__":
    B, N, E = 2, 8, 32
    num_heads = 4
    ff_hid = 64

    key = jax.random.PRNGKey(0)
    ks = jax.random.split(key, 10)
    f32, bf16 = jnp.float32, jnp.bfloat16

    params = {
        "ln1_g": jnp.ones((1, E), f32),
        "ln1_b": jnp.zeros((1, E), f32),
        # weights stored pre-transposed (in_features, out_features), bf16 MXU operands
        "wqkv": (jax.random.normal(ks[0], (E, 3 * E), f32) * 0.05).astype(bf16),
        "bqkv": jax.random.normal(ks[1], (1, 3 * E), f32) * 0.05,
        "wout": (jax.random.normal(ks[2], (E, E), f32) * 0.05).astype(bf16),
        "bout": jax.random.normal(ks[3], (1, E), f32) * 0.05,
        "ln2_g": jnp.ones((1, E), f32),
        "ln2_b": jnp.zeros((1, E), f32),
        "w1": (jax.random.normal(ks[4], (E, ff_hid), f32) * 0.05).astype(bf16),
        "b1": jax.random.normal(ks[5], (1, ff_hid), f32) * 0.05,
        "w2": (jax.random.normal(ks[6], (ff_hid, E), f32) * 0.05).astype(bf16),
        "b2": jax.random.normal(ks[7], (1, E), f32) * 0.05,
    }
    x = jax.random.normal(ks[8], (B, N, E), f32)

    out = jax.block_until_ready(transformer_block(x, params, num_heads=num_heads))
    ref = reference_transformer_block(x, params, num_heads=num_heads)

    assert out.shape == (B, N, E)
    err = jnp.max(jnp.abs(out - ref))
    # bf16 MXU operands + approximate reciprocal vs f32 reference -> relaxed tolerance
    assert jnp.allclose(out, ref, atol=2e-2, rtol=2e-2), f"max err {err}"
    print("KERNEL_OK")
</pallas_src>

<mosaic_0001>
module attributes {stable_mosaic.version = 11 : i64} {
  func.func @ln_qkv_kernel(%arg0: i32, %arg1: i32, %arg2: memref<1x8x32xf32, #tpu.memory_space<vmem>>, %arg3: memref<1x32xf32, #tpu.memory_space<vmem>>, %arg4: memref<1x32xf32, #tpu.memory_space<vmem>>, %arg5: memref<32x96xbf16, #tpu.memory_space<vmem>>, %arg6: memref<1x96xf32, #tpu.memory_space<vmem>>, %arg7: memref<1x8x96xf32, #tpu.memory_space<vmem>>) attributes {dimension_semantics = [#tpu.dimension_semantics<parallel>, #tpu.dimension_semantics<parallel>], iteration_bounds = array<i64: 2, 1>, scalar_prefetch = 0 : i64, scratch_operands = 0 : i64, tpu.core_type = #tpu.core_type<tc>, window_params = [{transform_indices = @transform_0, window_bounds = array<i64: 1, 8, 32>}, {pipeline_mode = #tpu.pipeline_mode<synchronous>, transform_indices = @transform_1, window_bounds = array<i64: 1, 32>}, {pipeline_mode = #tpu.pipeline_mode<synchronous>, transform_indices = @transform_2, window_bounds = array<i64: 1, 32>}, {pipeline_mode = #tpu.pipeline_mode<synchronous>, transform_indices = @transform_3, window_bounds = array<i64: 32, 96>}, {pipeline_mode = #tpu.pipeline_mode<synchronous>, transform_indices = @transform_4, window_bounds = array<i64: 1, 96>}, {transform_indices = @transform_5, window_bounds = array<i64: 1, 8, 96>}]} {
    %c0 = arith.constant 0 : index
    %c0_0 = arith.constant 0 : index
    %c0_1 = arith.constant 0 : index
    %0 = vector.load %arg2[%c0, %c0_0, %c0_1] : memref<1x8x32xf32, #tpu.memory_space<vmem>>, vector<1x8x32xf32>
    %1 = vector.shape_cast %0 : vector<1x8x32xf32> to vector<8x32xf32>
    %c0_2 = arith.constant 0 : index
    %c0_3 = arith.constant 0 : index
    %2 = vector.load %arg3[%c0_2, %c0_3] : memref<1x32xf32, #tpu.memory_space<vmem>>, vector<1x32xf32>
    %3 = vector.shape_cast %2 : vector<1x32xf32> to vector<32xf32>
    %c0_4 = arith.constant 0 : index
    %c0_5 = arith.constant 0 : index
    %4 = vector.load %arg4[%c0_4, %c0_5] : memref<1x32xf32, #tpu.memory_space<vmem>>, vector<1x32xf32>
    %5 = vector.shape_cast %4 : vector<1x32xf32> to vector<32xf32>
    %cst = arith.constant dense<0.000000e+00> : vector<8xf32>
    %6 = vector.multi_reduction <add>, %1, %cst [1] : vector<8x32xf32> to vector<8xf32>
    %7 = vector.shape_cast %6 : vector<8xf32> to vector<8x1xf32>
    %cst_6 = arith.constant 3.200000e+01 : f32
    %8 = vector.broadcast %cst_6 : f32 to vector<8x1xf32>
    %9 = arith.divf %7, %8 : vector<8x1xf32>
    %10 = arith.mulf %1, %1 : vector<8x32xf32>
    %cst_7 = arith.constant dense<0.000000e+00> : vector<8xf32>
    %11 = vector.multi_reduction <add>, %10, %cst_7 [1] : vector<8x32xf32> to vector<8xf32>
    %12 = vector.shape_cast %11 : vector<8xf32> to vector<8x1xf32>
    %cst_8 = arith.constant 3.200000e+01 : f32
    %13 = vector.broadcast %cst_8 : f32 to vector<8x1xf32>
    %14 = arith.divf %12, %13 : vector<8x1xf32>
    %15 = arith.mulf %9, %9 : vector<8x1xf32>
    %16 = arith.subf %14, %15 : vector<8x1xf32>
    %cst_9 = arith.constant 0.000000e+00 : f32
    %17 = vector.broadcast %cst_9 : f32 to vector<8x1xf32>
    %18 = arith.maximumf %16, %17 : vector<8x1xf32>
    %19 = vector.broadcast %9 : vector<8x1xf32> to vector<8x32xf32>
    %20 = arith.subf %1, %19 : vector<8x32xf32>
    %cst_10 = arith.constant 9.99999974E-6 : f32
    %21 = vector.broadcast %cst_10 : f32 to vector<8x1xf32>
    %22 = arith.addf %18, %21 : vector<8x1xf32>
    %23 = math.rsqrt %22 : vector<8x1xf32>
    %24 = vector.broadcast %23 : vector<8x1xf32> to vector<8x32xf32>
    %25 = arith.mulf %20, %24 : vector<8x32xf32>
    %26 = vector.shape_cast %3 : vector<32xf32> to vector<1x32xf32>
    %27 = vector.broadcast %26 : vector<1x32xf32> to vector<8x32xf32>
    %28 = arith.mulf %25, %27 : vector<8x32xf32>
    %29 = vector.shape_cast %5 : vector<32xf32> to vector<1x32xf32>
    %30 = vector.broadcast %29 : vector<1x32xf32> to vector<8x32xf32>
    %31 = arith.addf %28, %30 : vector<8x32xf32>
    %c0_11 = arith.constant 0 : index
    %c0_12 = arith.constant 0 : index
    %32 = vector.load %arg5[%c0_11, %c0_12] : memref<32x96xbf16, #tpu.memory_space<vmem>>, vector<32x96xbf16>
    %33 = arith.truncf %31 : vector<8x32xf32> to vector<8x32xbf16>
    %cst_13 = arith.constant dense<0.000000e+00> : vector<8x96xf32>
    %34 = tpu.matmul %33, %32, %cst_13 {dimension_numbers = #tpu.dot_dimension_numbers<[1], [0], [0], [1], [0, 0, 1, 1], [], []>} : vector<8x32xbf16>, vector<32x96xbf16>, vector<8x96xf32> -> vector<8x96xf32>
    %c0_14 = arith.constant 0 : index
    %c0_15 = arith.constant 0 : index
    %35 = vector.load %arg6[%c0_14, %c0_15] : memref<1x96xf32, #tpu.memory_space<vmem>>, vector<1x96xf32>
    %36 = vector.shape_cast %35 : vector<1x96xf32> to vector<96xf32>
    %37 = vector.shape_cast %36 : vector<96xf32> to vector<1x96xf32>
    %38 = vector.broadcast %37 : vector<1x96xf32> to vector<8x96xf32>
    %39 = arith.addf %34, %38 : vector<8x96xf32>
    %c0_16 = arith.constant 0 : index
    %c0_17 = arith.constant 0 : index
    %c0_18 = arith.constant 0 : index
    %40 = vector.load %arg7[%c0_16, %c0_17, %c0_18] : memref<1x8x96xf32, #tpu.memory_space<vmem>>, vector<1x8x96xf32>
    %41 = vector.shape_cast %40 : vector<1x8x96xf32> to vector<8x96xf32>
    %42 = vector.shape_cast %39 : vector<8x96xf32> to vector<1x8x96xf32>
    tpu.vector_store %arg7[%c0_16, %c0_17, %c0_18], %42 {strides = array<i32>} : memref<1x8x96xf32, #tpu.memory_space<vmem>>, vector<1x8x96xf32>,
    return
  }
  func.func @transform_0(%arg0: i32, %arg1: i32) -> (i32, i32, i32) {
    %c0_i32 = arith.constant 0 : i32
    %c0_i32_0 = arith.constant 0 : i32
    return %arg0, %arg1, %c0_i32 : i32, i32, i32
  }
  func.func @transform_1(%arg0: i32, %arg1: i32) -> (i32, i32) {
    %c0_i32 = arith.constant 0 : i32
    %c0_i32_0 = arith.constant 0 : i32
    %c0_i32_1 = arith.constant 0 : i32
    return %c0_i32, %c0_i32_0 : i32, i32
  }
  func.func @transform_2(%arg0: i32, %arg1: i32) -> (i32, i32) {
    %c0_i32 = arith.constant 0 : i32
    %c0_i32_0 = arith.constant 0 : i32
    %c0_i32_1 = arith.constant 0 : i32
    return %c0_i32, %c0_i32_0 : i32, i32
  }
  func.func @transform_3(%arg0: i32, %arg1: i32) -> (i32, i32) {
    %c0_i32 = arith.constant 0 : i32
    %c0_i32_0 = arith.constant 0 : i32
    %c0_i32_1 = arith.constant 0 : i32
    return %c0_i32, %c0_i32_0 : i32, i32
  }
  func.func @transform_4(%arg0: i32, %arg1: i32) -> (i32, i32) {
    %c0_i32 = arith.constant 0 : i32
    %c0_i32_0 = arith.constant 0 : i32
    %c0_i32_1 = arith.constant 0 : i32
    return %c0_i32, %c0_i32_0 : i32, i32
  }
  func.func @transform_5(%arg0: i32, %arg1: i32) -> (i32, i32, i32) {
    %c0_i32 = arith.constant 0 : i32
    %c0_i32_0 = arith.constant 0 : i32
    return %arg0, %arg1, %c0_i32 : i32, i32, i32
  }
}

</mosaic_0001>

<llo_original>
// kernel: tpu_custom_call.1
$region0: #{tpu_custom_call.1}
  #allocation0 [shape = 'u32[]', space=smem, size = 0x4, offset = 0x4, fixed_abs, tag = 'smem constant byte address 0x4 - core index']
  #allocation1 [shape = 'u32[144,128]{1,0:T(1,128)}', space=vmem, size = 0x12000, scoped, tag = 'internal scratch']
  %s0 = inlined_call_operand.hbm [shape: f32[2,8,32], index: 0, kind: input, shape index: {}]
  %s1 = inlined_call_operand.vmem [shape: f32[1,32], index: 1, kind: input, shape index: {}]
  %s2 = inlined_call_operand.vmem [shape: f32[1,32], index: 2, kind: input, shape index: {}]
  %s3 = inlined_call_operand.hbm [shape: bf16[32,96], index: 3, kind: input, shape index: {}]
  %s4 = inlined_call_operand.vmem [shape: f32[1,96], index: 4, kind: input, shape index: {}]
  %s5 = inlined_call_operand.hbm [shape: f32[2,8,96], index: 5, kind: output, shape index: {}]
  %s6 = sld [smem:[#allocation0]]
  $region61: #{tpu_custom_call.1} parent=0
    _
  %s8 = ssub.s32 1, %s6
  %s9 = scalar_select 0, %s8, %s6
  $region1: #{tpu_custom_call.1} parent=0
    #allocation2 [shape = 'u8[8192]{0}', space=vmem, size = 0x2000, scoped, tag = 'input window, operand 0']
    #allocation3 [shape = 's32[2]{0}', space=sflag, size = 0x8, scoped, tag = 'scoped memory for tpu_custom_call.1']
    #allocation4 [shape = 's32[2]{0}', space=sflag, size = 0x8, scoped, tag = 'scoped memory for tpu_custom_call.1']
    #allocation5 [shape = 'u8[8192]{0}', space=vmem, size = 0x2000, scoped, tag = 'input window, operand 3, single buffered']
    #allocation6 [shape = 's32[1]{0}', space=sflag, size = 0x4, scoped, tag = 'scoped memory for tpu_custom_call.1']
    #allocation7 [shape = 'u8[8192]{0}', space=vmem, size = 0x2000, scoped, tag = 'output window, operand 0']
    %10 = vsyncpa [#allocation3], 0
    %s11 = scalar_lea.sflag [#allocation3], 1
    %12 = vsyncpa %s11, 0
    %13 = vsyncpa [#allocation6], 0
    %14 = vsyncpa [#allocation4], 0
    %s15 = scalar_lea.sflag [#allocation4], 1
    %16 = vsyncpa %s15, 0
    loop: start=0, step=1, limit=4
    $region2: #{tpu_custom_call.1} parent=1 // loop_pre_header
      _
    $region3: #{tpu_custom_call.1} parent=1 // loop_header
      %s18 = sphi 0, %s22
      %p19 = scmp.ge.s32.totalorder %s18, 4
      %s25 = sphi 0, %s37
      %s26 = sphi 0, %s33
      %s27 = sphi 0, %s25
      %s28 = sphi 0, %s26
      %s29 = sphi 0, %s27
      %s30 = sphi 0, %s28
      %s42 = sphi 0, %s44
      %s45 = sphi 0, %s42
      %s46 = sphi 0, %s45
      %s62 = sphi 0, %s46
      %s66 = sphi 0, %s66
      %s68 = sphi 0, %s66
      %s69 = sphi 0, %s68
      %s83 = sphi 0, %s69
      %s87 = sphi 0, %s87
      %s89 = sphi 0, %s87
      %s90 = sphi 0, %s89
      %s104 = sphi 0, %s90
      %s108 = sphi 0, %s108
      %s110 = sphi 0, %s108
      %s111 = sphi 0, %s110
      %s125 = sphi 0, %s111
      %s129 = sphi 0, %s129
      %s131 = sphi 0, %s129
      %s132 = sphi 0, %s131
      %s146 = sphi 0, %s132
      %s154 = sphi 0, %s156
      %s157 = sphi 0, %s154
      %s158 = sphi 0, %s157
      %s174 = sphi 0, %s158
    $region4: #{tpu_custom_call.1} parent=1 // loop_header_branch
      %21 = sbr.rel (%p19) target = $region8
    $region5: #{tpu_custom_call.1} parent=1 // loop_body
      %s23 = ssub.s32 %s18, 1
      %s24 = ssub.s32 %s18, 2
      %s31 = sadd.s32 1, %s26
      %p32 = scmp.ge.s32.totalorder %s31, 1
      %s33 = scalar_select %p32, 0, %s31
      %s34 = sadd.s32 1, %s25
      %s35 = scalar_select %p32, %s34, %s25
      %p36 = scmp.ge.s32.totalorder %s35, 2
      %s37 = scalar_select %p36, 0, %s35
      %s38 = ssub.s32 %s25, %s37
      %s39 = ssub.s32 %s26, %s33
      %s40 = sor.u32 %s38, %s39
      %p41 = scmp.eq.s32.totalorder %s40, 0
      %s43 = sadd.s32 %s42, 1
      %s44 = scalar_select %p41, %s42, %s43
      %p47 = pneg %p41
      %p48 = scmp.eq.s32.totalorder %s18, 1
      %p49 = por %p47, %p48
      %p50 = scmp.ne.s32.totalorder %s42, %s45
      %p51 = scmp.eq.s32.totalorder %s18, 0
      %p52 = por %p50, %p51
      %p53 = scmp.ne.s32.totalorder %s42, %s45
      %p54 = scmp.eq.s32.totalorder %s23, 1
      %p55 = por %p53, %p54
      %p56 = scmp.ne.s32.totalorder %s45, %s46
      %p57 = scmp.eq.s32.totalorder %s23, 0
      %p58 = por %p56, %p57
      %p59 = scmp.ne.s32.totalorder %s45, %s46
      %p60 = scmp.eq.s32.totalorder %s24, 1
      %p61 = por %p59, %p60
      %p63 = scmp.ne.s32.totalorder %s46, %s62
      %p64 = scmp.eq.s32.totalorder %s24, 0
      %p65 = por %p63, %p64
      %s67 = sadd.s32 %s66, 1
      %p70 = scmp.eq.s32.totalorder %s18, 1
      %p71 = scmp.ne.s32.totalorder %s66, %s68
      %p72 = scmp.eq.s32.totalorder %s18, 0
      %p73 = por %p71, %p72
      %p74 = scmp.ne.s32.totalorder %s66, %s68
      %p75 = scmp.eq.s32.totalorder %s23, 1
      %p76 = por %p74, %p75
      %p77 = scmp.ne.s32.totalorder %s68, %s69
      %p78 = scmp.eq.s32.totalorder %s23, 0
      %p79 = por %p77, %p78
      %p80 = scmp.ne.s32.totalorder %s68, %s69
      %p81 = scmp.eq.s32.totalorder %s24, 1
      %p82 = por %p80, %p81
      %p84 = scmp.ne.s32.totalorder %s69, %s83
      %p85 = scmp.eq.s32.totalorder %s24, 0
      %p86 = por %p84, %p85
      %s88 = sadd.s32 %s87, 1
      %p91 = scmp.eq.s32.totalorder %s18, 1
      %p92 = scmp.ne.s32.totalorder %s87, %s89
      %p93 = scmp.eq.s32.totalorder %s18, 0
      %p94 = por %p92, %p93
      %p95 = scmp.ne.s32.totalorder %s87, %s89
      %p96 = scmp.eq.s32.totalorder %s23, 1
      %p97 = por %p95, %p96
      %p98 = scmp.ne.s32.totalorder %s89, %s90
      %p99 = scmp.eq.s32.totalorder %s23, 0
      %p100 = por %p98, %p99
      %p101 = scmp.ne.s32.totalorder %s89, %s90
      %p102 = scmp.eq.s32.totalorder %s24, 1
      %p103 = por %p101, %p102
      %p105 = scmp.ne.s32.totalorder %s90, %s104
      %p106 = scmp.eq.s32.totalorder %s24, 0
      %p107 = por %p105, %p106
      %s109 = sadd.s32 %s108, 1
      %p112 = scmp.eq.s32.totalorder %s18, 1
      %p113 = scmp.ne.s32.totalorder %s108, %s110
      %p114 = scmp.eq.s32.totalorder %s18, 0
      %p115 = por %p113, %p114
      %p116 = scmp.ne.s32.totalorder %s108, %s110
      %p117 = scmp.eq.s32.totalorder %s23, 1
      %p118 = por %p116, %p117
      %p119 = scmp.ne.s32.totalorder %s110, %s111
      %p120 = scmp.eq.s32.totalorder %s23, 0
      %p121 = por %p119, %p120
      %p122 = scmp.ne.s32.totalorder %s110, %s111
      %p123 = scmp.eq.s32.totalorder %s24, 1
      %p124 = por %p122, %p123
      %p126 = scmp.ne.s32.totalorder %s111, %s125
      %p127 = scmp.eq.s32.totalorder %s24, 0
      %p128 = por %p126, %p127
      %s130 = sadd.s32 %s129, 1
      %p133 = scmp.eq.s32.totalorder %s18, 1
      %p134 = scmp.ne.s32.totalorder %s129, %s131
      %p135 = scmp.eq.s32.totalorder %s18, 0
      %p136 = por %p134, %p135
      %p137 = scmp.ne.s32.totalorder %s129, %s131
      %p138 = scmp.eq.s32.totalorder %s23, 1
      %p139 = por %p137, %p138
      %p140 = scmp.ne.s32.totalorder %s131, %s132
      %p141 = scmp.eq.s32.totalorder %s23, 0
      %p142 = por %p140, %p141
      %p143 = scmp.ne.s32.totalorder %s131, %s132
      %p144 = scmp.eq.s32.totalorder %s24, 1
      %p145 = por %p143, %p144
      %p147 = scmp.ne.s32.totalorder %s132, %s146
      %p148 = scmp.eq.s32.totalorder %s24, 0
      %p149 = por %p147, %p148
      %s150 = ssub.s32 %s25, %s37
      %s151 = ssub.s32 %s26, %s33
      %s152 = sor.u32 %s150, %s151
      %p153 = scmp.eq.s32.totalorder %s152, 0
      %s155 = sadd.s32 %s154, 1
      %s156 = scalar_select %p153, %s154, %s155
      %p159 = pneg %p153
      %p160 = scmp.eq.s32.totalorder %s18, 1
      %p161 = por %p159, %p160
      %p162 = scmp.ne.s32.totalorder %s154, %s157
      %p163 = scmp.eq.s32.totalorder %s18, 0
      %p164 = por %p162, %p163
      %p165 = scmp.ne.s32.totalorder %s154, %s157
      %p166 = scmp.eq.s32.totalorder %s23, 1
      %p167 = por %p165, %p166
      %p168 = scmp.ne.s32.totalorder %s157, %s158
      %p169 = scmp.eq.s32.totalorder %s23, 0
      %p170 = por %p168, %p169
      %p171 = scmp.ne.s32.totalorder %s157, %s158
      %p172 = scmp.eq.s32.totalorder %s24, 1
      %p173 = por %p171, %p172
      %p175 = scmp.ne.s32.totalorder %s158, %s174
      %p176 = scmp.eq.s32.totalorder %s24, 0
      %p177 = por %p175, %p176
      %p178 = scmp.le.s32.totalorder 1, %s18
      %p179 = scmp.lt.s32.totalorder %s18, 3
      %p180 = pnand %p178, %p179
      %p181 = pneg %p180
      // Predicated region
      $region9: #{tpu_custom_call.1} parent=5 // pred_check
        _
      $region10: #{tpu_custom_call.1} parent=5 // pred_check_branch
        %183 = sbr.rel (%p180) target = $region12
      $region11: #{tpu_custom_call.1} parent=5 // pred_region
        %s184 = ssub.s32 %s18, 1
        // Predicated region
        $region13: #{tpu_custom_call.1} parent=11 // pred_check
          %p185 = pneg %p79
        $region14: #{tpu_custom_call.1} parent=11 // pred_check_branch
          %187 = sbr.rel (%p185) target = $region16
        $region15: #{tpu_custom_call.1} parent=11 // pred_region
          _
        $region16: #{tpu_custom_call.1} parent=11 // pred_fallthru
          _
        // Predicated region
        $region17: #{tpu_custom_call.1} parent=11 // pred_check
          %p188 = pneg %p100
        $region18: #{tpu_custom_call.1} parent=11 // pred_check_branch
          %190 = sbr.rel (%p188) target = $region20
        $region19: #{tpu_custom_call.1} parent=11 // pred_region
          _
        $region20: #{tpu_custom_call.1} parent=11 // pred_fallthru
          _
        // Predicated region
        $region21: #{tpu_custom_call.1} parent=11 // pred_check
          %p191 = pneg %p121
        $region22: #{tpu_custom_call.1} parent=11 // pred_check_branch
          %193 = sbr.rel (%p191) target = $region24
        $region23: #{tpu_custom_call.1} parent=11 // pred_region
          %s195 = ssub.s32 256, 256
          %196 = vsyncadd [#allocation6], %s195
          %s197 = sshll.u32 [#allocation5], 4
          %s198 = int_to_ptr.vmem [resolvable:$true] %s197
          %203 = dma.hbm_to_vmem [thread:$0]  %s3, 256, %s198, [#allocation6], 64, 64, 4
        $region24: #{tpu_custom_call.1} parent=11 // pred_fallthru
          _
        // Predicated region
        $region25: #{tpu_custom_call.1} parent=11 // pred_check
          %p204 = pneg %p142
        $region26: #{tpu_custom_call.1} parent=11 // pred_check_branch
          %206 = sbr.rel (%p204) target = $region28
        $region27: #{tpu_custom_call.1} parent=11 // pred_region
          _
        $region28: #{tpu_custom_call.1} parent=11 // pred_fallthru
          _
      $region12: #{tpu_custom_call.1} parent=5 // pred_fallthru
        _
      %p207 = scmp.lt.s32.totalorder %s18, 2
      // Predicated region
      $region29: #{tpu_custom_call.1} parent=5 // pred_check
        %p208 = pneg %p207
      $region30: #{tpu_custom_call.1} parent=5 // pred_check_branch
        %210 = sbr.rel (%p208) target = $region32
      $region31: #{tpu_custom_call.1} parent=5 // pred_region
        // Predicated region
        $region33: #{tpu_custom_call.1} parent=31 // pred_check
          %p211 = pneg %p52
        $region34: #{tpu_custom_call.1} parent=31 // pred_check_branch
          %213 = sbr.rel (%p211) target = $region36
        $region35: #{tpu_custom_call.1} parent=31 // pred_region
          %s214 = sand.u32 %s42, 1
          %s215 = scalar_lea.sflag [#allocation3], %s214
          %s216 = sand.u32 %s42, 1
          %s217 = smul.addr %s216, 8
          %s218 = scalar_lea.vmem [#allocation2], %s217
          %s220 = ssub.s32 128, 128
          %221 = vsyncadd %s215, %s220
          %s222 = sadd.s32 %s26, %s25
          %s223 = smul.addr %s222, 128
          %s224 = scalar_lea.hbm %s0, %s223
          %s226 = sshll.u32 %s218, 4
          %s227 = int_to_ptr.vmem [resolvable:$true] %s226
          %229 = dma.hbm_to_vmem [thread:$0]  %s224, 128, %s227, %s215
        $region36: #{tpu_custom_call.1} parent=31 // pred_fallthru
          _
      $region32: #{tpu_custom_call.1} parent=5 // pred_fallthru
        _
      %p230 = scmp.le.s32.totalorder 1, %s18
      %p231 = scmp.lt.s32.totalorder %s18, 3
      %p232 = pnand %p230, %p231
      %p233 = pneg %p232
      // Predicated region
      $region37: #{tpu_custom_call.1} parent=5 // pred_check
        _
      $region38: #{tpu_custom_call.1} parent=5 // pred_check_branch
        %235 = sbr.rel (%p232) target = $region40
      $region39: #{tpu_custom_call.1} parent=5 // pred_region
        %s236 = ssub.s32 %s18, 1
        %s237 = sand.u32 %s45, 1
        %s238 = scalar_lea.sflag [#allocation3], %s237
        %s239 = sand.u32 %s45, 1
        %s240 = smul.addr %s239, 8
        %s241 = scalar_lea.vmem [#allocation2], %s240
        // Predicated region
        $region41: #{tpu_custom_call.1} parent=39 // pred_check
          %p242 = pneg %p58
        $region42: #{tpu_custom_call.1} parent=39 // pred_check_branch
          %244 = sbr.rel (%p242) target = $region44
        $region43: #{tpu_custom_call.1} parent=39 // pred_region
          %245 = dma.done %s238, 128
        $region44: #{tpu_custom_call.1} parent=39 // pred_fallthru
          _
        // Predicated region
        $region45: #{tpu_custom_call.1} parent=39 // pred_check
          %p246 = pneg %p121
        $region46: #{tpu_custom_call.1} parent=39 // pred_check_branch
          %248 = sbr.rel (%p246) target = $region48
        $region47: #{tpu_custom_call.1} parent=39 // pred_region
          %249 = dma.done [#allocation6], 256
        $region48: #{tpu_custom_call.1} parent=39 // pred_fallthru
          _
        %s250 = sand.u32 %s45, 1
        %s251 = scalar_lea.sflag [#allocation3], %s250
        %s252 = sand.u32 %s45, 1
        %s253 = smul.addr %s252, 8
        %s254 = scalar_lea.vmem [#allocation2], %s253
        %p255 = pneg %p58
        %p256 = pneg %p55
        %p257 = pneg %p79
        %p258 = pneg %p76
        %p259 = pneg %p100
        %p260 = pneg %p97
        %p261 = pneg %p121
        %p262 = pneg %p118
        %p263 = pneg %p142
        %p264 = pneg %p139
        %p265 = pneg %p170
        %p266 = pneg %p167
        %s267 = sand.u32 %s157, 1
        %s268 = scalar_lea.sflag [#allocation4], %s267
        %s269 = sand.u32 %s157, 1
        %s270 = smul.addr %s269, 8
        %s271 = scalar_lea.vmem [#allocation7], %s270
        %v273 = vld [vmem:[%s241] sm:$0xff]
        %v274 = vld [vmem:[%s1] sm:$0x1]
        %v275 = vld [vmem:[%s2] sm:$0x1]
        %vm276 = vcmask 261120
        %v277 = vsel %vm276, %v273, 0.0
        %278 = vadd.xlane.f32.xlu0 %v277
        %v279 = vpop.xlane.xlu0 %278
        %v280 = vrcp.pop 32.0
        %v281 = vmul.f32 %v279, %v280
        %v282 = vmul.f32 %v273, %v273
        %v283 = vsel %vm276, %v282, 0.0
        %284 = vadd.xlane.f32.xlu0 %v283
        %v285 = vpop.xlane.xlu0 %284
        %v286 = vmul.f32 %v285, %v280
        %v287 = vmul.f32 %v281, %v281
        %v288 = vsub.f32 %v286, %v287
        %v289 = vmax.f32 %v288, 0.0
        %v290 = vsub.f32 %v273, %v281
        %v291 = vadd.f32 %v289, 1e-05
        %v292 = vrsqrt.pop %v291
        %v293 = vmul.f32 %v290, %v292
        %v295 = vlaneseq
        %v296 = vshrl.u32 %v295, 7
        %v297 = vsub.s32 0, %v296
        %v298 = vrot.slane %v274, %v297
        %v300 = vmul.f32 %v293, %v298
        %v302 = vlaneseq
        %v303 = vshrl.u32 %v302, 7
        %v304 = vsub.s32 0, %v303
        %v305 = vrot.slane %v275, %v304
        %v307 = vadd.f32 %v300, %v305
        %v308 = vld [vmem:[#allocation5] sm:$0xf]
        %v309 = vld [vmem:[#allocation5 + $0x4] sm:$0xf]
        %v310 = vld [vmem:[#allocation5 + $0x8] sm:$0xf]
        %v311 = vld [vmem:[#allocation5 + $0xc] sm:$0xf]
        %v312 = vpack.c.bf16 %v307, %v307
        %v313 = vld [vmem:[%s4] sm:$0x1]
        %v315 = vlaneseq
        %v316 = vshrl.u32 %v315, 7
        %v317 = vsub.s32 0, %v316
        %v318 = vrot.slane %v313, %v317
        %v324 = vunpack.c.l.b16 %v308
        %v325 = vunpack.c.l.b16 %v309
        %v326 = vunpack.c.l.b16 %v310
        %v327 = vunpack.c.l.b16 %v311
        %v328 = vpack.c.b16 %v325, %v324
        %v329 = vpack.c.b16 %v327, %v326
        %v333 = vsel %vm276, %v312, 0
        %335 = vmatprep.subr.bf16.mxu0 0
        %336 = vmatpush1.bf16.msra.mxu0 %v328
        %337 = vmatprep.subr.bf16.mxu0 0
        %338 = vmatpush1.bf16.msra.mxu0 %v329
        %339 = vmatprep.subr.bf16.mxu0 0
        %340 = vmatpush1.bf16.msra.mxu0 0
        %341 = vmatprep.subr.bf16.mxu0 0
        %342 = vmatpush1.bf16.msra.mxu0 0
        %343 = vmatprep.subr.bf16.mxu0 0
        %344 = vmatpush1.bf16.msra.mxu0 0
        %345 = vmatprep.subr.bf16.mxu0 0
        %346 = vmatpush1.bf16.msra.mxu0 0
        %347 = vmatprep.subr.bf16.mxu0 0
        %348 = vmatpush1.bf16.msra.mxu0 0
        %349 = vmatprep.subr.bf16.mxu0 0
        %350 = vmatpush1.bf16.msra.mxu0 0
        %351 = vmatprep.subr.bf16.mxu0 0
        %352 = vmatpush1.bf16.msra.mxu0 0
        %353 = vmatprep.subr.bf16.mxu0 0
        %354 = vmatpush1.bf16.msra.mxu0 0
        %355 = vmatprep.subr.bf16.mxu0 0
        %356 = vmatpush1.bf16.msra.mxu0 0
        %357 = vmatprep.subr.bf16.mxu0 0
        %358 = vmatpush1.bf16.msra.mxu0 0
        %359 = vmatprep.subr.bf16.mxu0 0
        %360 = vmatpush1.bf16.msra.mxu0 0
        %361 = vmatprep.subr.bf16.mxu0 0
        %362 = vmatpush1.bf16.msra.mxu0 0
        %363 = vmatprep.subr.bf16.mxu0 0
        %364 = vmatpush1.bf16.msra.mxu0 0
        %365 = vmatprep.subr.bf16.mxu0 0
        %366 = vmatpush1.bf16.msra.mxu0 0
        %367 = vmatprep.mubr.bf16.mxu0 0
        %368 = vmatmul.mubr.bf16.gmra.mrb[0].mxu0 %v333
        %v369 = vpop.f32.mrb[0].mxu0
        %v370 = vadd.f32 %v318, %v369
        %v371 = vpop.f32.mrb[0].mxu0
        %v372 = vpop.f32.mrb[0].mxu0
        %v373 = vpop.f32.mrb[0].mxu0
        %374 = vdwg.mxu0
        %vm375 = vcmask 785408
        %376 = vst.msk [vmem:[%s271] sm:$0xff] %vm375, %v370
        %s377 = sand.u32 %s157, 1
        %s378 = scalar_lea.sflag [#allocation4], %s377
        %s379 = sand.u32 %s157, 1
        %s380 = smul.addr %s379, 8
        %s381 = scalar_lea.vmem [#allocation7], %s380
        // Predicated region
        $region49: #{tpu_custom_call.1} parent=39 // pred_check
          %p382 = pneg %p167
        $region50: #{tpu_custom_call.1} parent=39 // pred_check_branch
          %384 = sbr.rel (%p382) target = $region52
        $region51: #{tpu_custom_call.1} parent=39 // pred_region
          %s386 = ssub.s32 128, 128
          %387 = vsyncadd %s378, %s386
          %s388 = sadd.s32 %s28, %s27
          %s389 = smul.addr %s388, 128
          %s390 = scalar_lea.hbm %s5, %s389
          %s392 = sshll.u32 %s381, 4
          %s393 = int_to_ptr.vmem [resolvable:$true] %s392
          %395 = dma.vmem_to_hbm [thread:$0]  %s393, 128, %s390, %s378
        $region52: #{tpu_custom_call.1} parent=39 // pred_fallthru
          _
      $region40: #{tpu_custom_call.1} parent=5 // pred_fallthru
        _
      %p396 = scmp.le.s32.totalorder 2, %s18
      // Predicated region
      $region53: #{tpu_custom_call.1} parent=5 // pred_check
        %p397 = pneg %p396
      $region54: #{tpu_custom_call.1} parent=5 // pred_check_branch
        %399 = sbr.rel (%p397) target = $region56
      $region55: #{tpu_custom_call.1} parent=5 // pred_region
        %s400 = ssub.s32 %s18, 2
        // Predicated region
        $region57: #{tpu_custom_call.1} parent=55 // pred_check
          %p401 = pneg %p173
        $region58: #{tpu_custom_call.1} parent=55 // pred_check_branch
          %403 = sbr.rel (%p401) target = $region60
        $region59: #{tpu_custom_call.1} parent=55 // pred_region
          %s404 = sand.u32 %s158, 1
          %s405 = scalar_lea.sflag [#allocation4], %s404
          %s406 = sand.u32 %s158, 1
          %s407 = smul.addr %s406, 8
          %s408 = scalar_lea.vmem [#allocation7], %s407
          %409 = dma.done %s405, 128
        $region60: #{tpu_custom_call.1} parent=55 // pred_fallthru
          _
      $region56: #{tpu_custom_call.1} parent=5 // pred_fallthru
        _
    $region6: #{tpu_custom_call.1} parent=1 // loop_footer
      %s22 = sadd.s32 1, %s18
    $region7: #{tpu_custom_call.1} parent=1 // loop_footer_branch
      %17 = sbr.rel target = $region3
    $region8: #{tpu_custom_call.1} parent=1 // loop_exit
      _
    %410 = vsyncpa [#allocation3], 1
    %s411 = scalar_lea.sflag [#allocation3], 1
    %412 = vsyncpa %s411, 1
    %413 = vsyncpa [#allocation6], 1
    %414 = vsyncpa [#allocation4], 1
    %s415 = scalar_lea.sflag [#allocation4], 1
    %416 = vsyncpa %s415, 1

</llo_original>
